<compile_context>
chip_gen: v7x
topology: tpu7x:2x2x1
jax: 0.10.0
libtpu: 0.0.40
codegen_flags: <defaults>
</compile_context>

<pallas_src>
from functools import partial

import jax
import jax.numpy as jnp
from jax.experimental import pallas as pl
from jax.experimental.pallas import tpu as pltpu


def _round_up(n, m):
    return ((n + m - 1) // m) * m


def _lstm_decoder_kernel(xh_ref, c_ref,
                         w1_ref, b1_ref,
                         w2_ref, b2_ref,
                         ow_ref, ob_ref,
                         pred_ref, hout_ref, cout_ref):
    H = c_ref.shape[-1]

    def fused_cell(gates, c):
        # Full-width transcendentals on the (B, 4H) gate vreg, then slice.
        sig = jax.nn.sigmoid(gates)
        th = jnp.tanh(gates)
        f_s = sig[:, 0 * H:1 * H]
        i_s = sig[:, 1 * H:2 * H]
        g_t = th[:, 2 * H:3 * H]
        # NOTE: reference applies NO sigmoid to o_t -- slice from raw gates.
        o_t = gates[:, 3 * H:4 * H]
        c_new = c * f_s + i_s * g_t
        h_new = o_t * jnp.tanh(c_new)
        return h_new, c_new

    # Layer 1: single fused matmul of [x_emb, h0] against [[U1]; [W1]].
    gates1 = (jnp.dot(xh_ref[...], w1_ref[...],
                      preferred_element_type=jnp.float32) + b1_ref[...])
    h1, c1 = fused_cell(gates1, c_ref[...])

    # Layer 2: input == initial hidden state (h1), so W2eff = U2 + W2.
    gates2 = (jnp.dot(h1, w2_ref[...],
                      preferred_element_type=jnp.float32) + b2_ref[...])
    h2, c2 = fused_cell(gates2, c1)

    # Output projection; weights are pre-padded to a lane-dense (multiple of
    # 128) column count, so this store is a full-width vst.
    pred_ref[...] = (jnp.dot(h2, ow_ref[...],
                             preferred_element_type=jnp.float32) + ob_ref[...])
    hout_ref[...] = h2
    cout_ref[...] = c2


def init_params(key, input_size, embedding_size, hidden_size):
    """Deterministic synthetic parameters (PyTorch nn.Linear-style uniform init)."""
    ks = jax.random.split(key, 8)

    def linear(k, fan_in, fan_out):
        kw, kb = jax.random.split(k)
        bound = 1.0 / float(fan_in) ** 0.5
        w = jax.random.uniform(kw, (fan_in, fan_out), jnp.float32, -bound, bound)
        b = jax.random.uniform(kb, (1, fan_out), jnp.float32, -bound, bound)
        return w, b

    p = {}
    p['embedding'] = jax.random.normal(ks[0], (input_size, embedding_size),
                                       jnp.float32)
    # LSTMBlock layer 1: U_f: (E -> 4H), W_f: (H -> 4H)
    p['u1_w'], p['u1_b'] = linear(ks[1], embedding_size, 4 * hidden_size)
    p['w1_w'], p['w1_b'] = linear(ks[2], hidden_size, 4 * hidden_size)
    # LSTMBlock layer 2: U_f: (H -> 4H), W_f: (H -> 4H)
    p['u2_w'], p['u2_b'] = linear(ks[3], hidden_size, 4 * hidden_size)
    p['w2_w'], p['w2_b'] = linear(ks[4], hidden_size, 4 * hidden_size)
    # output projection: (H -> input_size)
    p['out_w'], p['out_b'] = linear(ks[5], hidden_size, input_size)
    return p


def fuse_params(params):
    """One-time parameter prep: fuse layer-1/layer-2 weights+biases and pad the
    output projection to a lane-dense (multiple-of-128) column count."""
    V = params['out_w'].shape[1]
    VP = _round_up(V, 128)
    return {
        'embedding': params['embedding'],
        # layer 1: [[U1]; [W1]]  -> (E+H, 4H),   b1 = u1_b + w1_b
        'w1': jnp.concatenate([params['u1_w'], params['w1_w']], axis=0),
        'b1': params['u1_b'] + params['w1_b'],
        # layer 2: U2 + W2 (exact because layer-2 input == its initial hidden)
        'w2': params['u2_w'] + params['w2_w'],
        'b2': params['u2_b'] + params['w2_b'],
        # lane-dense output projection
        'out_w': jnp.pad(params['out_w'], ((0, 0), (0, VP - V))),
        'out_b': jnp.pad(params['out_b'], ((0, 0), (0, VP - V))),
    }


@partial(jax.jit, static_argnames=('vocab_size',))
def lstm_decoder_forward(fused, x_tokens, enc_output, hidden_state, cell_state,
                         *, vocab_size):
    """Mirrors LSTMDecoder.forward(x, enc_output, hidden_state, cell_state)
    with use_attention=False (module default). enc_output is unused."""
    del enc_output  # unused without attention
    # dec_input = self.decoder_embedder(x.unsqueeze(1)) -> (B, 1, E); seq_len=1
    x_emb = jnp.take(fused['embedding'], x_tokens, axis=0)   # (B, E)
    xh = jnp.concatenate([x_emb, hidden_state], axis=-1)     # (B, E+H)
    B = xh.shape[0]
    H = hidden_state.shape[-1]
    VP = fused['out_w'].shape[-1]

    vmem = pl.BlockSpec(memory_space=pltpu.MemorySpace.VMEM)
    pred_pad, h_out, c_out = pl.pallas_call(
        _lstm_decoder_kernel,
        out_shape=(jax.ShapeDtypeStruct((B, VP), jnp.float32),
                   jax.ShapeDtypeStruct((B, H), jnp.float32),
                   jax.ShapeDtypeStruct((B, H), jnp.float32)),
        in_specs=[vmem] * 8,
        out_specs=(vmem, vmem, vmem),
        # carry the cell state in place across decode steps
        input_output_aliases={1: 2},
    )(xh, cell_state,
      fused['w1'], fused['b1'], fused['w2'], fused['b2'],
      fused['out_w'], fused['out_b'])
    return pred_pad[:, :vocab_size], h_out, c_out


def lstm_decoder_reference(params, x_tokens, enc_output, hidden_state, cell_state):
    """Pure-JAX reference replicating the PyTorch forward semantics (unfused)."""
    del enc_output
    x = jnp.take(params['embedding'], x_tokens, axis=0)
    H = hidden_state.shape[-1]

    def cell(x_t, h, c, uw, ub, ww, wb):
        g = x_t @ uw + ub + h @ ww + wb
        f_t, i_t, g_t, o_t = (g[:, :H], g[:, H:2 * H], g[:, 2 * H:3 * H],
                              g[:, 3 * H:])
        c_new = c * jax.nn.sigmoid(f_t) + jax.nn.sigmoid(i_t) * jnp.tanh(g_t)
        h_new = o_t * jnp.tanh(c_new)
        return h_new, c_new

    h1, c1 = cell(x, hidden_state, cell_state,
                  params['u1_w'], params['u1_b'], params['w1_w'], params['w1_b'])
    h2, c2 = cell(h1, h1, c1,
                  params['u2_w'], params['u2_b'], params['w2_w'], params['w2_b'])
    pred = h2 @ params['out_w'] + params['out_b']
    return pred, h2, c2


if __name__ == "__main__":
    # Small shapes consistent with the module.
    INPUT_SIZE = 64   # vocab size
    EMBED = 32
    HIDDEN = 32
    BATCH = 2
    SEQ_ENC = 8       # encoder sequence length (unused: no attention)

    root = jax.random.PRNGKey(0)
    kp, kx, kh, kc, ke = jax.random.split(root, 5)

    params = init_params(kp, INPUT_SIZE, EMBED, HIDDEN)
    fused = fuse_params(params)

    x_tokens = jax.random.randint(kx, (BATCH,), 0, INPUT_SIZE, dtype=jnp.int32)
    hidden_state = jax.random.normal(kh, (BATCH, HIDDEN), jnp.float32)
    cell_state = jax.random.normal(kc, (BATCH, HIDDEN), jnp.float32)
    enc_output = jax.random.normal(ke, (BATCH, SEQ_ENC, HIDDEN), jnp.float32)

    pred, h_out, c_out = lstm_decoder_forward(fused, x_tokens, enc_output,
                                              hidden_state, cell_state,
                                              vocab_size=INPUT_SIZE)
    jax.block_until_ready((pred, h_out, c_out))

    # Correctness check against pure-JAX (unfused) reference. Weight fusion
    # changes f32 summation order, so tolerance is slightly relaxed vs exact.
    pred_r, h_r, c_r = lstm_decoder_reference(params, x_tokens, enc_output,
                                              hidden_state, cell_state)
    assert pred.shape == (BATCH, INPUT_SIZE)
    assert h_out.shape == (BATCH, HIDDEN) and c_out.shape == (BATCH, HIDDEN)
    assert jnp.allclose(pred, pred_r, atol=1e-4, rtol=1e-4)
    assert jnp.allclose(h_out, h_r, atol=1e-4, rtol=1e-4)
    assert jnp.allclose(c_out, c_r, atol=1e-4, rtol=1e-4)

    print("KERNEL_OK")
</pallas_src>

<mosaic_0001>
module attributes {stable_mosaic.version = 11 : i64} {
  func.func @_lstm_decoder_kernel(%arg0: memref<2x64xf32, #tpu.memory_space<vmem>>, %arg1: memref<2x32xf32, #tpu.memory_space<vmem>>, %arg2: memref<64x128xf32, #tpu.memory_space<vmem>>, %arg3: memref<1x128xf32, #tpu.memory_space<vmem>>, %arg4: memref<32x128xf32, #tpu.memory_space<vmem>>, %arg5: memref<1x128xf32, #tpu.memory_space<vmem>>, %arg6: memref<32x128xf32, #tpu.memory_space<vmem>>, %arg7: memref<1x128xf32, #tpu.memory_space<vmem>>, %arg8: memref<2x128xf32, #tpu.memory_space<vmem>>, %arg9: memref<2x32xf32, #tpu.memory_space<vmem>>, %arg10: memref<2x32xf32, #tpu.memory_space<vmem>>) attributes {dimension_semantics = [], scalar_prefetch = 0 : i64, scratch_operands = 0 : i64, tpu.core_type = #tpu.core_type<tc>} {
    %c0 = arith.constant 0 : index
    %c0_0 = arith.constant 0 : index
    %0 = vector.load %arg0[%c0, %c0_0] : memref<2x64xf32, #tpu.memory_space<vmem>>, vector<2x64xf32>
    %c0_1 = arith.constant 0 : index
    %c0_2 = arith.constant 0 : index
    %1 = vector.load %arg2[%c0_1, %c0_2] : memref<64x128xf32, #tpu.memory_space<vmem>>, vector<64x128xf32>
    %cst = arith.constant dense<0.000000e+00> : vector<2x128xf32>
    %2 = tpu.matmul %0, %1, %cst {dimension_numbers = #tpu.dot_dimension_numbers<[1], [0], [0], [1], [0, 0, 1, 1], [], []>} : vector<2x64xf32>, vector<64x128xf32>, vector<2x128xf32> -> vector<2x128xf32>
    %c0_3 = arith.constant 0 : index
    %c0_4 = arith.constant 0 : index
    %3 = vector.load %arg3[%c0_3, %c0_4] : memref<1x128xf32, #tpu.memory_space<vmem>>, vector<1x128xf32>
    %4 = vector.broadcast %3 : vector<1x128xf32> to vector<2x128xf32>
    %5 = arith.addf %2, %4 : vector<2x128xf32>
    %c0_5 = arith.constant 0 : index
    %c0_6 = arith.constant 0 : index
    %6 = vector.load %arg1[%c0_5, %c0_6] : memref<2x32xf32, #tpu.memory_space<vmem>>, vector<2x32xf32>
    %7 = arith.negf %5 : vector<2x128xf32>
    %8 = math.exp %7 : vector<2x128xf32>
    %cst_7 = arith.constant 1.000000e+00 : f32
    %9 = vector.broadcast %cst_7 : f32 to vector<2x128xf32>
    %10 = arith.addf %9, %8 : vector<2x128xf32>
    %11 = arith.divf %9, %10 : vector<2x128xf32>
    %12 = math.tanh %5 : vector<2x128xf32>
    %13 = vector.extract_strided_slice %11 {offsets = [0, 0], sizes = [2, 32], strides = [1, 1]} : vector<2x128xf32> to vector<2x32xf32>
    %14 = vector.extract_strided_slice %11 {offsets = [0, 32], sizes = [2, 32], strides = [1, 1]} : vector<2x128xf32> to vector<2x32xf32>
    %15 = vector.extract_strided_slice %12 {offsets = [0, 64], sizes = [2, 32], strides = [1, 1]} : vector<2x128xf32> to vector<2x32xf32>
    %16 = vector.extract_strided_slice %5 {offsets = [0, 96], sizes = [2, 32], strides = [1, 1]} : vector<2x128xf32> to vector<2x32xf32>
    %17 = arith.mulf %6, %13 : vector<2x32xf32>
    %18 = arith.mulf %14, %15 : vector<2x32xf32>
    %19 = arith.addf %17, %18 : vector<2x32xf32>
    %20 = math.tanh %19 : vector<2x32xf32>
    %21 = arith.mulf %16, %20 : vector<2x32xf32>
    %c0_8 = arith.constant 0 : index
    %c0_9 = arith.constant 0 : index
    %22 = vector.load %arg4[%c0_8, %c0_9] : memref<32x128xf32, #tpu.memory_space<vmem>>, vector<32x128xf32>
    %cst_10 = arith.constant dense<0.000000e+00> : vector<2x128xf32>
    %23 = tpu.matmul %21, %22, %cst_10 {dimension_numbers = #tpu.dot_dimension_numbers<[1], [0], [0], [1], [0, 0, 1, 1], [], []>} : vector<2x32xf32>, vector<32x128xf32>, vector<2x128xf32> -> vector<2x128xf32>
    %c0_11 = arith.constant 0 : index
    %c0_12 = arith.constant 0 : index
    %24 = vector.load %arg5[%c0_11, %c0_12] : memref<1x128xf32, #tpu.memory_space<vmem>>, vector<1x128xf32>
    %25 = vector.broadcast %24 : vector<1x128xf32> to vector<2x128xf32>
    %26 = arith.addf %23, %25 : vector<2x128xf32>
    %27 = arith.negf %26 : vector<2x128xf32>
    %28 = math.exp %27 : vector<2x128xf32>
    %cst_13 = arith.constant 1.000000e+00 : f32
    %29 = vector.broadcast %cst_13 : f32 to vector<2x128xf32>
    %30 = arith.addf %29, %28 : vector<2x128xf32>
    %31 = arith.divf %29, %30 : vector<2x128xf32>
    %32 = math.tanh %26 : vector<2x128xf32>
    %33 = vector.extract_strided_slice %31 {offsets = [0, 0], sizes = [2, 32], strides = [1, 1]} : vector<2x128xf32> to vector<2x32xf32>
    %34 = vector.extract_strided_slice %31 {offsets = [0, 32], sizes = [2, 32], strides = [1, 1]} : vector<2x128xf32> to vector<2x32xf32>
    %35 = vector.extract_strided_slice %32 {offsets = [0, 64], sizes = [2, 32], strides = [1, 1]} : vector<2x128xf32> to vector<2x32xf32>
    %36 = vector.extract_strided_slice %26 {offsets = [0, 96], sizes = [2, 32], strides = [1, 1]} : vector<2x128xf32> to vector<2x32xf32>
    %37 = arith.mulf %19, %33 : vector<2x32xf32>
    %38 = arith.mulf %34, %35 : vector<2x32xf32>
    %39 = arith.addf %37, %38 : vector<2x32xf32>
    %40 = math.tanh %39 : vector<2x32xf32>
    %41 = arith.mulf %36, %40 : vector<2x32xf32>
    %c0_14 = arith.constant 0 : index
    %c0_15 = arith.constant 0 : index
    %42 = vector.load %arg6[%c0_14, %c0_15] : memref<32x128xf32, #tpu.memory_space<vmem>>, vector<32x128xf32>
    %cst_16 = arith.constant dense<0.000000e+00> : vector<2x128xf32>
    %43 = tpu.matmul %41, %42, %cst_16 {dimension_numbers = #tpu.dot_dimension_numbers<[1], [0], [0], [1], [0, 0, 1, 1], [], []>} : vector<2x32xf32>, vector<32x128xf32>, vector<2x128xf32> -> vector<2x128xf32>
    %c0_17 = arith.constant 0 : index
    %c0_18 = arith.constant 0 : index
    %44 = vector.load %arg7[%c0_17, %c0_18] : memref<1x128xf32, #tpu.memory_space<vmem>>, vector<1x128xf32>
    %45 = vector.broadcast %44 : vector<1x128xf32> to vector<2x128xf32>
    %46 = arith.addf %43, %45 : vector<2x128xf32>
    %c0_19 = arith.constant 0 : index
    %c0_20 = arith.constant 0 : index
    %47 = vector.load %arg8[%c0_19, %c0_20] : memref<2x128xf32, #tpu.memory_space<vmem>>, vector<2x128xf32>
    tpu.vector_store %arg8[%c0_19, %c0_20], %46 {strides = array<i32>} : memref<2x128xf32, #tpu.memory_space<vmem>>, vector<2x128xf32>,
    %c0_21 = arith.constant 0 : index
    %c0_22 = arith.constant 0 : index
    %48 = vector.load %arg9[%c0_21, %c0_22] : memref<2x32xf32, #tpu.memory_space<vmem>>, vector<2x32xf32>
    tpu.vector_store %arg9[%c0_21, %c0_22], %41 {strides = array<i32>} : memref<2x32xf32, #tpu.memory_space<vmem>>, vector<2x32xf32>,
    %c0_23 = arith.constant 0 : index
    %c0_24 = arith.constant 0 : index
    %49 = vector.load %arg10[%c0_23, %c0_24] : memref<2x32xf32, #tpu.memory_space<vmem>>, vector<2x32xf32>
    tpu.vector_store %arg10[%c0_23, %c0_24], %39 {strides = array<i32>} : memref<2x32xf32, #tpu.memory_space<vmem>>, vector<2x32xf32>,
    return
  }
}

</mosaic_0001>

<llo_original>
// kernel: lstm_decoder_forward.1
$region0: #{lstm_decoder_forward.1}
  #allocation0 [shape = 'u32[]', space=smem, size = 0x4, offset = 0x4, fixed_abs, tag = 'smem constant byte address 0x4 - core index']
  #allocation1 [shape = 'u32[144,128]{1,0:T(1,128)}', space=vmem, size = 0x12000, scoped, tag = 'internal scratch']
  %s0 = inlined_call_operand.vmem [shape: f32[2,64], index: 0, kind: input, shape index: {}]
  %s1 = inlined_call_operand.vmem [shape: f32[2,32], index: 1, kind: input, shape index: {}, may-alias: {1,10}]
  %s2 = inlined_call_operand.vmem [shape: f32[64,128], index: 2, kind: input, shape index: {}]
  %s3 = inlined_call_operand.vmem [shape: f32[1,128], index: 3, kind: input, shape index: {}]
  %s4 = inlined_call_operand.vmem [shape: f32[32,128], index: 4, kind: input, shape index: {}]
  %s5 = inlined_call_operand.vmem [shape: f32[1,128], index: 5, kind: input, shape index: {}]
  %s6 = inlined_call_operand.vmem [shape: f32[32,128], index: 6, kind: input, shape index: {}]
  %s7 = inlined_call_operand.vmem [shape: f32[1,128], index: 7, kind: input, shape index: {}]
  %s8 = inlined_call_operand.hbm [shape: f32[2,128], index: 8, kind: output, shape index: {0}]
  %s9 = inlined_call_operand.hbm [shape: f32[2,32], index: 9, kind: output, shape index: {1}]
  %s10 = inlined_call_operand.vmem [shape: f32[2,32], index: 10, kind: output, shape index: {2}, may-alias: {1,10}]
  %11 = xla_tuple %s8, %s9, %s10
  %s12 = sld [smem:[#allocation0]]
  $region58: #{lstm_decoder_forward.1} parent=0
    _
  %s14 = ssub.s32 1, %s12
  %s15 = scalar_select 0, %s14, %s12
  $region1: #{lstm_decoder_forward.1} parent=0
    #allocation2 [shape = 'u8[1024]{0}', space=vmem, size = 0x400, scoped, tag = 'output window, operand 0, single buffered']
    #allocation3 [shape = 's32[1]{0}', space=sflag, size = 0x4, scoped, tag = 'scoped memory for lstm_decoder_forward.1']
    #allocation4 [shape = 'u8[1024]{0}', space=vmem, size = 0x400, scoped, tag = 'output window, operand 1, single buffered']
    #allocation5 [shape = 's32[1]{0}', space=sflag, size = 0x4, scoped, tag = 'scoped memory for lstm_decoder_forward.1']
    %16 = vsyncpa [#allocation3], 0
    %17 = vsyncpa [#allocation5], 0
    // Predicated region
    $region2: #{lstm_decoder_forward.1} parent=1 // pred_check
      _
    $region3: #{lstm_decoder_forward.1} parent=1 // pred_check_branch
      %19 = sbr.rel (0) target = $region5
    $region4: #{lstm_decoder_forward.1} parent=1 // pred_region
      _
    $region5: #{lstm_decoder_forward.1} parent=1 // pred_fallthru
      _
    // Predicated region
    $region6: #{lstm_decoder_forward.1} parent=1 // pred_check
      _
    $region7: #{lstm_decoder_forward.1} parent=1 // pred_check_branch
      %21 = sbr.rel (0) target = $region9
    $region8: #{lstm_decoder_forward.1} parent=1 // pred_region
      _
    $region9: #{lstm_decoder_forward.1} parent=1 // pred_fallthru
      _
    // Predicated region
    $region10: #{lstm_decoder_forward.1} parent=1 // pred_check
      _
    $region11: #{lstm_decoder_forward.1} parent=1 // pred_check_branch
      %23 = sbr.rel (0) target = $region13
    $region12: #{lstm_decoder_forward.1} parent=1 // pred_region
      _
    $region13: #{lstm_decoder_forward.1} parent=1 // pred_fallthru
      _
    // Predicated region
    $region14: #{lstm_decoder_forward.1} parent=1 // pred_check
      _
    $region15: #{lstm_decoder_forward.1} parent=1 // pred_check_branch
      %25 = sbr.rel (0) target = $region17
    $region16: #{lstm_decoder_forward.1} parent=1 // pred_region
      _
    $region17: #{lstm_decoder_forward.1} parent=1 // pred_fallthru
      _
    // Predicated region
    $region18: #{lstm_decoder_forward.1} parent=1 // pred_check
      _
    $region19: #{lstm_decoder_forward.1} parent=1 // pred_check_branch
      %27 = sbr.rel (0) target = $region21
    $region20: #{lstm_decoder_forward.1} parent=1 // pred_region
      _
    $region21: #{lstm_decoder_forward.1} parent=1 // pred_fallthru
      _
    // Predicated region
    $region22: #{lstm_decoder_forward.1} parent=1 // pred_check
      _
    $region23: #{lstm_decoder_forward.1} parent=1 // pred_check_branch
      %29 = sbr.rel (0) target = $region25
    $region24: #{lstm_decoder_forward.1} parent=1 // pred_region
      _
    $region25: #{lstm_decoder_forward.1} parent=1 // pred_fallthru
      _
    // Predicated region
    $region26: #{lstm_decoder_forward.1} parent=1 // pred_check
      _
    $region27: #{lstm_decoder_forward.1} parent=1 // pred_check_branch
      %31 = sbr.rel (0) target = $region29
    $region28: #{lstm_decoder_forward.1} parent=1 // pred_region
      _
    $region29: #{lstm_decoder_forward.1} parent=1 // pred_fallthru
      _
    // Predicated region
    $region30: #{lstm_decoder_forward.1} parent=1 // pred_check
      _
    $region31: #{lstm_decoder_forward.1} parent=1 // pred_check_branch
      %33 = sbr.rel (0) target = $region33
    $region32: #{lstm_decoder_forward.1} parent=1 // pred_region
      _
    $region33: #{lstm_decoder_forward.1} parent=1 // pred_fallthru
      _
    %v34 = vld [vmem:[%s0] sm:$0x3]
    %v35 = vld [vmem:[%s2] sm:$0xff]
    %v36 = vld [vmem:[%s2 + $0x8] sm:$0xff]
    %v37 = vld [vmem:[%s2 + $0x10] sm:$0xff]
    %v38 = vld [vmem:[%s2 + $0x18] sm:$0xff]
    %v39 = vld [vmem:[%s2 + $0x20] sm:$0xff]
    %v40 = vld [vmem:[%s2 + $0x28] sm:$0xff]
    %v41 = vld [vmem:[%s2 + $0x30] sm:$0xff]
    %v42 = vld [vmem:[%s2 + $0x38] sm:$0xff]
    %v43 = vld [vmem:[%s3] sm:$0x1]
    %v45 = vlaneseq
    %v46 = vshrl.u32 %v45, 7
    %v47 = vsub.s32 0, %v46
    %v48 = vrot.slane %v43, %v47
    %vm50 = vcmask 523264
    %v52 = vsel %vm50, %v34, 0
    %54 = vmatprep.subr.mxu0 0.0
    %55 = vmatpush1.msra.mxu0 %v35
    %56 = vmatprep.subr.mxu0 0.0
    %57 = vmatpush1.msra.mxu0 %v36
    %58 = vmatprep.subr.mxu0 0.0
    %59 = vmatpush1.msra.mxu0 %v37
    %60 = vmatprep.subr.mxu0 0.0
    %61 = vmatpush1.msra.mxu0 %v38
    %62 = vmatprep.subr.mxu0 0.0
    %63 = vmatpush1.msra.mxu0 %v39
    %64 = vmatprep.subr.mxu0 0.0
    %65 = vmatpush1.msra.mxu0 %v40
    %66 = vmatprep.subr.mxu0 0.0
    %67 = vmatpush1.msra.mxu0 %v41
    %68 = vmatprep.subr.mxu0 0.0
    %69 = vmatpush1.msra.mxu0 %v42
    %70 = vmatprep.subr.mxu0 0.0
    %71 = vmatpush1.msra.mxu0 0.0
    %72 = vmatprep.subr.mxu0 0.0
    %73 = vmatpush1.msra.mxu0 0.0
    %74 = vmatprep.subr.mxu0 0.0
    %75 = vmatpush1.msra.mxu0 0.0
    %76 = vmatprep.subr.mxu0 0.0
    %77 = vmatpush1.msra.mxu0 0.0
    %78 = vmatprep.subr.mxu0 0.0
    %79 = vmatpush1.msra.mxu0 0.0
    %80 = vmatprep.subr.mxu0 0.0
    %81 = vmatpush1.msra.mxu0 0.0
    %82 = vmatprep.subr.mxu0 0.0
    %83 = vmatpush1.msra.mxu0 0.0
    %84 = vmatprep.subr.mxu0 0.0
    %85 = vmatpush1.msra.mxu0 0.0
    %86 = vmatprep.subr.mxu0 0.0
    %87 = vmatpush1.msra.mxu0 0.0
    %88 = vmatprep.subr.mxu0 0.0
    %89 = vmatpush1.msra.mxu0 0.0
    %90 = vmatprep.subr.mxu0 0.0
    %91 = vmatpush1.msra.mxu0 0.0
    %92 = vmatprep.subr.mxu0 0.0
    %93 = vmatpush1.msra.mxu0 0.0
    %94 = vmatprep.subr.mxu0 0.0
    %95 = vmatpush1.msra.mxu0 0.0
    %96 = vmatprep.subr.mxu0 0.0
    %97 = vmatpush1.msra.mxu0 0.0
    %98 = vmatprep.subr.mxu0 0.0
    %99 = vmatpush1.msra.mxu0 0.0
    %100 = vmatprep.subr.mxu0 0.0
    %101 = vmatpush1.msra.mxu0 0.0
    %102 = vmatprep.subr.mxu0 0.0
    %103 = vmatpush1.msra.mxu0 0.0
    %104 = vmatprep.subr.mxu0 0.0
    %105 = vmatpush1.msra.mxu0 0.0
    %106 = vmatprep.subr.mxu0 0.0
    %107 = vmatpush1.msra.mxu0 0.0
    %108 = vmatprep.subr.mxu0 0.0
    %109 = vmatpush1.msra.mxu0 0.0
    %110 = vmatprep.subr.mxu0 0.0
    %111 = vmatpush1.msra.mxu0 0.0
    %112 = vmatprep.subr.mxu0 0.0
    %113 = vmatpush1.msra.mxu0 0.0
    %114 = vmatprep.subr.mxu0 0.0
    %115 = vmatpush1.msra.mxu0 0.0
    %116 = vmatprep.subr.mxu0 0.0
    %117 = vmatpush1.msra.mxu0 0.0
    %118 = vmatprep.mubr.f32.mxu0 0.0
    %119 = vmatmul.mubr.f32.gmra.mrb[0].mxu0 %v52
    %v120 = vpop.f32.mrb[0].mxu0
    %v121 = vadd.f32 %v48, %v120
    %v122 = vpop.f32.mrb[0].mxu0
    %123 = vdwg.mxu0
    %v124 = vld [vmem:[%s1] sm:$0x3]
    %v125 = vxor.u32 %v121, 2147483648
    %v126 = vmul.f32 %v125, 1.442695
    %v127 = vpow.pop %v126
    %v128 = vadd.f32 %v127, 1.0
    %v129 = vrcp.pop %v128
    %v130 = vmul.f32 1.0, %v129
    %v131 = vtanh.pop %v121
    %v132 = vmul.f32 %v124, %v130
    %134 = vrot.lane.b32.xlu0 %v131, 96
    %v135 = vpop.permute.xlu0 %134
    %v137 = vmul.f32 %v130, %v135
    %139 = vrot.lane.b32.xlu0 %v137, 96
    %v140 = vpop.permute.xlu0 %139
    %v142 = vadd.f32 %v132, %v140
    %v143 = vtanh.pop %v142
    %145 = vrot.lane.b32.xlu0 %v143, 96
    %v146 = vpop.permute.xlu0 %145
    %v148 = vmul.f32 %v121, %v146
    %v149 = vld [vmem:[%s4] sm:$0xff]
    %v150 = vld [vmem:[%s4 + $0x8] sm:$0xff]
    %v151 = vld [vmem:[%s4 + $0x10] sm:$0xff]
    %v152 = vld [vmem:[%s4 + $0x18] sm:$0xff]
    %v153 = vld [vmem:[%s5] sm:$0x1]
    %v155 = vlaneseq
    %v156 = vshrl.u32 %v155, 7
    %v157 = vsub.s32 0, %v156
    %v158 = vrot.slane %v153, %v157
    %161 = vrot.lane.b32.xlu0 %v148, 32
    %v162 = vpop.permute.xlu0 %161
    %vm163 = vcmask 261120
    %v164 = vsel %vm163, %v162, 0
    %166 = vmatprep.subr.mxu0 0.0
    %167 = vmatpush1.msra.mxu0 %v149
    %168 = vmatprep.subr.mxu0 0.0
    %169 = vmatpush1.msra.mxu0 %v150
    %170 = vmatprep.subr.mxu0 0.0
    %171 = vmatpush1.msra.mxu0 %v151
    %172 = vmatprep.subr.mxu0 0.0
    %173 = vmatpush1.msra.mxu0 %v152
    %174 = vmatprep.subr.mxu0 0.0
    %175 = vmatpush1.msra.mxu0 0.0
    %176 = vmatprep.subr.mxu0 0.0
    %177 = vmatpush1.msra.mxu0 0.0
    %178 = vmatprep.subr.mxu0 0.0
    %179 = vmatpush1.msra.mxu0 0.0
    %180 = vmatprep.subr.mxu0 0.0
    %181 = vmatpush1.msra.mxu0 0.0
    %182 = vmatprep.subr.mxu0 0.0
    %183 = vmatpush1.msra.mxu0 0.0
    %184 = vmatprep.subr.mxu0 0.0
    %185 = vmatpush1.msra.mxu0 0.0
    %186 = vmatprep.subr.mxu0 0.0
    %187 = vmatpush1.msra.mxu0 0.0
    %188 = vmatprep.subr.mxu0 0.0
    %189 = vmatpush1.msra.mxu0 0.0
    %190 = vmatprep.subr.mxu0 0.0
    %191 = vmatpush1.msra.mxu0 0.0
    %192 = vmatprep.subr.mxu0 0.0
    %193 = vmatpush1.msra.mxu0 0.0
    %194 = vmatprep.subr.mxu0 0.0
    %195 = vmatpush1.msra.mxu0 0.0
    %196 = vmatprep.subr.mxu0 0.0
    %197 = vmatpush1.msra.mxu0 0.0
    %198 = vmatprep.subr.mxu0 0.0
    %199 = vmatpush1.msra.mxu0 0.0
    %200 = vmatprep.subr.mxu0 0.0
    %201 = vmatpush1.msra.mxu0 0.0
    %202 = vmatprep.subr.mxu0 0.0
    %203 = vmatpush1.msra.mxu0 0.0
    %204 = vmatprep.subr.mxu0 0.0
    %205 = vmatpush1.msra.mxu0 0.0
    %206 = vmatprep.subr.mxu0 0.0
    %207 = vmatpush1.msra.mxu0 0.0
    %208 = vmatprep.subr.mxu0 0.0
    %209 = vmatpush1.msra.mxu0 0.0
    %210 = vmatprep.subr.mxu0 0.0
    %211 = vmatpush1.msra.mxu0 0.0
    %212 = vmatprep.subr.mxu0 0.0
    %213 = vmatpush1.msra.mxu0 0.0
    %214 = vmatprep.subr.mxu0 0.0
    %215 = vmatpush1.msra.mxu0 0.0
    %216 = vmatprep.subr.mxu0 0.0
    %217 = vmatpush1.msra.mxu0 0.0
    %218 = vmatprep.subr.mxu0 0.0
    %219 = vmatpush1.msra.mxu0 0.0
    %220 = vmatprep.subr.mxu0 0.0
    %221 = vmatpush1.msra.mxu0 0.0
    %222 = vmatprep.subr.mxu0 0.0
    %223 = vmatpush1.msra.mxu0 0.0
    %224 = vmatprep.subr.mxu0 0.0
    %225 = vmatpush1.msra.mxu0 0.0
    %226 = vmatprep.subr.mxu0 0.0
    %227 = vmatpush1.msra.mxu0 0.0
    %228 = vmatprep.subr.mxu0 0.0
    %229 = vmatpush1.msra.mxu0 0.0
    %230 = vmatprep.mubr.f32.mxu0 0.0
    %231 = vmatmul.mubr.f32.gmra.mrb[0].mxu0 %v164
    %v232 = vpop.f32.mrb[0].mxu0
    %v233 = vadd.f32 %v158, %v232
    %v234 = vpop.f32.mrb[0].mxu0
    %235 = vdwg.mxu0
    %v236 = vxor.u32 %v233, 2147483648
    %v237 = vmul.f32 %v236, 1.442695
    %v238 = vpow.pop %v237
    %v239 = vadd.f32 %v238, 1.0
    %v240 = vrcp.pop %v239
    %v241 = vmul.f32 1.0, %v240
    %v242 = vtanh.pop %v233
    %v243 = vmul.f32 %v142, %v241
    %245 = vrot.lane.b32.xlu0 %v242, 96
    %v246 = vpop.permute.xlu0 %245
    %v248 = vmul.f32 %v241, %v246
    %250 = vrot.lane.b32.xlu0 %v248, 96
    %v251 = vpop.permute.xlu0 %250
    %v253 = vadd.f32 %v243, %v251
    %v254 = vtanh.pop %v253
    %256 = vrot.lane.b32.xlu0 %v254, 96
    %v257 = vpop.permute.xlu0 %256
    %v259 = vmul.f32 %v233, %v257
    %v260 = vld [vmem:[%s6] sm:$0xff]
    %v261 = vld [vmem:[%s6 + $0x8] sm:$0xff]
    %v262 = vld [vmem:[%s6 + $0x10] sm:$0xff]
    %v263 = vld [vmem:[%s6 + $0x18] sm:$0xff]
    %v264 = vld [vmem:[%s7] sm:$0x1]
    %v266 = vlaneseq
    %v267 = vshrl.u32 %v266, 7
    %v268 = vsub.s32 0, %v267
    %v269 = vrot.slane %v264, %v268
    %272 = vrot.lane.b32.xlu0 %v259, 32
    %v273 = vpop.permute.xlu0 %272
    %v274 = vsel %vm163, %v273, 0
    %276 = vmatprep.subr.mxu0 0.0
    %277 = vmatpush1.msra.mxu0 %v260
    %278 = vmatprep.subr.mxu0 0.0
    %279 = vmatpush1.msra.mxu0 %v261
    %280 = vmatprep.subr.mxu0 0.0
    %281 = vmatpush1.msra.mxu0 %v262
    %282 = vmatprep.subr.mxu0 0.0
    %283 = vmatpush1.msra.mxu0 %v263
    %284 = vmatprep.subr.mxu0 0.0
    %285 = vmatpush1.msra.mxu0 0.0
    %286 = vmatprep.subr.mxu0 0.0
    %287 = vmatpush1.msra.mxu0 0.0
    %288 = vmatprep.subr.mxu0 0.0
    %289 = vmatpush1.msra.mxu0 0.0
    %290 = vmatprep.subr.mxu0 0.0
    %291 = vmatpush1.msra.mxu0 0.0
    %292 = vmatprep.subr.mxu0 0.0
    %293 = vmatpush1.msra.mxu0 0.0
    %294 = vmatprep.subr.mxu0 0.0
    %295 = vmatpush1.msra.mxu0 0.0
    %296 = vmatprep.subr.mxu0 0.0
    %297 = vmatpush1.msra.mxu0 0.0
    %298 = vmatprep.subr.mxu0 0.0
    %299 = vmatpush1.msra.mxu0 0.0
    %300 = vmatprep.subr.mxu0 0.0
    %301 = vmatpush1.msra.mxu0 0.0
    %302 = vmatprep.subr.mxu0 0.0
    %303 = vmatpush1.msra.mxu0 0.0
    %304 = vmatprep.subr.mxu0 0.0
    %305 = vmatpush1.msra.mxu0 0.0
    %306 = vmatprep.subr.mxu0 0.0
    %307 = vmatpush1.msra.mxu0 0.0
    %308 = vmatprep.subr.mxu0 0.0
    %309 = vmatpush1.msra.mxu0 0.0
    %310 = vmatprep.subr.mxu0 0.0
    %311 = vmatpush1.msra.mxu0 0.0
    %312 = vmatprep.subr.mxu0 0.0
    %313 = vmatpush1.msra.mxu0 0.0
    %314 = vmatprep.subr.mxu0 0.0
    %315 = vmatpush1.msra.mxu0 0.0
    %316 = vmatprep.subr.mxu0 0.0
    %317 = vmatpush1.msra.mxu0 0.0
    %318 = vmatprep.subr.mxu0 0.0
    %319 = vmatpush1.msra.mxu0 0.0
    %320 = vmatprep.subr.mxu0 0.0
    %321 = vmatpush1.msra.mxu0 0.0
    %322 = vmatprep.subr.mxu0 0.0
    %323 = vmatpush1.msra.mxu0 0.0
    %324 = vmatprep.subr.mxu0 0.0
    %325 = vmatpush1.msra.mxu0 0.0
    %326 = vmatprep.subr.mxu0 0.0
    %327 = vmatpush1.msra.mxu0 0.0
    %328 = vmatprep.subr.mxu0 0.0
    %329 = vmatpush1.msra.mxu0 0.0
    %330 = vmatprep.subr.mxu0 0.0
    %331 = vmatpush1.msra.mxu0 0.0
    %332 = vmatprep.subr.mxu0 0.0
    %333 = vmatpush1.msra.mxu0 0.0
    %334 = vmatprep.subr.mxu0 0.0
    %335 = vmatpush1.msra.mxu0 0.0
    %336 = vmatprep.subr.mxu0 0.0
    %337 = vmatpush1.msra.mxu0 0.0
    %338 = vmatprep.subr.mxu0 0.0
    %339 = vmatpush1.msra.mxu0 0.0
    %340 = vmatprep.mubr.f32.mxu0 0.0
    %341 = vmatmul.mubr.f32.gmra.mrb[0].mxu0 %v274
    %v342 = vpop.f32.mrb[0].mxu0
    %v343 = vadd.f32 %v269, %v342
    %v344 = vpop.f32.mrb[0].mxu0
    %345 = vdwg.mxu0
    %346 = vst [vmem:[#allocation2] sm:$0x3] %v343
    %vm348 = vcmask 254976
    %349 = vst.msk [vmem:[#allocation4] sm:$0x3] %vm348, %v273
    %350 = vst.msk [vmem:[%s10] sm:$0x3] %vm348, %v253
    // Predicated region
    $region34: #{lstm_decoder_forward.1} parent=1 // pred_check
      _
    $region35: #{lstm_decoder_forward.1} parent=1 // pred_check_branch
      %352 = sbr.rel (0) target = $region37
    $region36: #{lstm_decoder_forward.1} parent=1 // pred_region
      %s354 = ssub.s32 32, 32
      %355 = vsyncadd [#allocation3], %s354
      %s357 = sshll.u32 [#allocation2], 4
      %s358 = int_to_ptr.vmem [resolvable:$true] %s357
      %360 = dma.vmem_to_hbm [thread:$0]  %s358, 32, %s8, [#allocation3]
    $region37: #{lstm_decoder_forward.1} parent=1 // pred_fallthru
      _
    // Predicated region
    $region38: #{lstm_decoder_forward.1} parent=1 // pred_check
      _
    $region39: #{lstm_decoder_forward.1} parent=1 // pred_check_branch
      %362 = sbr.rel (0) target = $region41
    $region40: #{lstm_decoder_forward.1} parent=1 // pred_region
      %s364 = ssub.s32 32, 32
      %365 = vsyncadd [#allocation5], %s364
      %s367 = sshll.u32 [#allocation4], 4
      %s368 = int_to_ptr.vmem [resolvable:$true] %s367
      %370 = dma.vmem_to_hbm [thread:$0]  %s368, 32, %s9, [#allocation5]
    $region41: #{lstm_decoder_forward.1} parent=1 // pred_fallthru
      _
    // Predicated region
    $region42: #{lstm_decoder_forward.1} parent=1 // pred_check
      _
    $region43: #{lstm_decoder_forward.1} parent=1 // pred_check_branch
      %372 = sbr.rel (0) target = $region45
    $region44: #{lstm_decoder_forward.1} parent=1 // pred_region
      _
    $region45: #{lstm_decoder_forward.1} parent=1 // pred_fallthru
      _
    // Predicated region
    $region46: #{lstm_decoder_forward.1} parent=1 // pred_check
      _
    $region47: #{lstm_decoder_forward.1} parent=1 // pred_check_branch
      %374 = sbr.rel (0) target = $region49
    $region48: #{lstm_decoder_forward.1} parent=1 // pred_region
      %375 = dma.done [#allocation3], 32
    $region49: #{lstm_decoder_forward.1} parent=1 // pred_fallthru
      _
    // Predicated region
    $region50: #{lstm_decoder_forward.1} parent=1 // pred_check
      _
    $region51: #{lstm_decoder_forward.1} parent=1 // pred_check_branch
      %377 = sbr.rel (0) target = $region53
    $region52: #{lstm_decoder_forward.1} parent=1 // pred_region
      %378 = dma.done [#allocation5], 32
    $region53: #{lstm_decoder_forward.1} parent=1 // pred_fallthru
      _
    // Predicated region
    $region54: #{lstm_decoder_forward.1} parent=1 // pred_check
      _
    $region55: #{lstm_decoder_forward.1} parent=1 // pred_check_branch
      %380 = sbr.rel (0) target = $region57
    $region56: #{lstm_decoder_forward.1} parent=1 // pred_region
      _
    $region57: #{lstm_decoder_forward.1} parent=1 // pred_fallthru
      _
    %381 = vsyncpa [#allocation3], 1
    %382 = vsyncpa [#allocation5], 1

</llo_original>
